<compile_context>
chip_gen: v7x
topology: tpu7x:2x2x1
jax: 0.10.0
libtpu: 0.0.40
codegen_flags: <defaults>
</compile_context>

<pallas_src>
import functools

import jax
import jax.numpy as jnp
from jax.experimental import pallas as pl
from jax.experimental.pallas import tpu as pltpu


# ----------------------------- kernel body -----------------------------

def attention_head_kernel(x_ref, w_ref, b_ref, z_ref, q_s, k_s, v_s, *, S, q):
    """Fused QKV projection + attention core for one batch tile.

    x_ref : (TB, S*q)        flattened input rows
    w_ref : (S*q, 3*S*q)     [WQ^T | WK^T | coeff*WV^T]
    b_ref : (1, 3*S*q)       [bQ   | bK   | coeff*bV  ]
    z_ref : (TB, S*q)        flattened output rows (lane-dense)
    q_s/k_s/v_s : (TB, S, q) VMEM scratch holding the 3-D Q/K/V views
    """
    Sq = S * q

    # Fused Q/K/V projection on the MXU, f32 accumulation.
    y = (
        jnp.dot(x_ref[...], w_ref[...], preferred_element_type=jnp.float32)
        + b_ref[...]
    )  # (TB, 3*Sq)

    # Split the flat projection into (TB, S, q) Q/K/V tiles entirely in VMEM
    # (static slices + scratch stores; no jnp.reshape needed in-kernel).
    for s in range(S):
        q_s[:, s, :] = y[:, 0 * Sq + s * q: 0 * Sq + (s + 1) * q]
        k_s[:, s, :] = y[:, 1 * Sq + s * q: 1 * Sq + (s + 1) * q]
        v_s[:, s, :] = y[:, 2 * Sq + s * q: 2 * Sq + (s + 1) * q]

    Q = q_s[...]
    K = k_s[...]
    V = v_s[...]  # coeff = 1/sqrt(q) is already folded into V's weights/bias

    # scores[b, s, t] = sum_d Q[b, s, d] * K[b, t, d]
    scores = jnp.einsum("bsd,btd->bst", Q, K, preferred_element_type=jnp.float32)

    # PyTorch applies nn.Softmax(dim=1) to the (B, S, S) score tensor, i.e.
    # normalization runs over axis 1 (column-wise), NOT the usual last axis.
    m = jnp.max(scores, axis=1, keepdims=True)
    e = jnp.exp(scores - m)
    denom = jnp.sum(e, axis=1, keepdims=True)
    p = e * pl.reciprocal(denom, approx=True)  # EUP reciprocal, VALU stays free

    # Z[b, s, d] = sum_t P[b, s, t] * V[b, t, d]   (V already scaled by coeff)
    z = jnp.einsum("bst,btd->bsd", p, V, preferred_element_type=jnp.float32)

    # Write the lane-dense flat output slab.
    for s in range(S):
        z_ref[:, s * q:(s + 1) * q] = z[:, s, :]


# ----------------------------- pallas wrapper -----------------------------

def attention_head(x, w_packed, b_packed, max_seq_length, qkv_size):
    """x: (B, S, q) float32 -> Z: (B, S, q) float32 (one fused pallas_call)."""
    S, q = max_seq_length, qkv_size
    Sq = S * q
    B = x.shape[0]
    x_flat = x.reshape(B, Sq)

    # Batch tiling: tile in blocks of 8 rows when possible (parallel axis for
    # v7x's 2 TensorCores); otherwise one step with the full (tiny) batch.
    block_b = 8 if (B % 8 == 0) else B
    grid = (B // block_b,)

    z_flat = pl.pallas_call(
        functools.partial(attention_head_kernel, S=S, q=q),
        out_shape=jax.ShapeDtypeStruct((B, Sq), jnp.float32),
        grid=grid,
        in_specs=[
            pl.BlockSpec((block_b, Sq), lambda i: (i, 0)),
            # Constant block index -> weights/bias stay resident across steps.
            pl.BlockSpec((Sq, 3 * Sq), lambda i: (0, 0)),
            pl.BlockSpec((1, 3 * Sq), lambda i: (0, 0)),
        ],
        out_specs=pl.BlockSpec((block_b, Sq), lambda i: (i, 0)),
        scratch_shapes=[
            pltpu.VMEM((block_b, S, q), jnp.float32),  # Q
            pltpu.VMEM((block_b, S, q), jnp.float32),  # K
            pltpu.VMEM((block_b, S, q), jnp.float32),  # V (pre-scaled)
        ],
        compiler_params=pltpu.CompilerParams(
            dimension_semantics=("parallel",),
        ),
    )(x_flat, w_packed, b_packed)

    return z_flat.reshape(B, S, q)


# ----------------------------- parameter packing -----------------------------

def pack_params(WQ, bQ, WK, bK, WV, bV, qkv_size):
    """torch Linear is y = x @ W^T + b; pack [WQ^T | WK^T | coeff*WV^T] and
    fold the 1/sqrt(qkv_size) output scale into the V weights/bias."""
    coeff = 1.0 / (float(qkv_size) ** 0.5)
    w_packed = jnp.concatenate([WQ.T, WK.T, coeff * WV.T], axis=1)      # (Sq, 3Sq)
    b_packed = jnp.concatenate([bQ, bK, coeff * bV], axis=0)[None, :]   # (1, 3Sq)
    return w_packed, b_packed


# ----------------------------- pure-JAX reference -----------------------------

def ref_attention_head(x, WQ, bQ, WK, bK, WV, bV, S, q):
    B = x.shape[0]
    xf = x.reshape(B, -1)
    Q = (xf @ WQ.T + bQ).reshape(B, S, q)
    K = (xf @ WK.T + bK).reshape(B, S, q)
    V = (xf @ WV.T + bV).reshape(B, S, q)
    scores = Q @ jnp.swapaxes(K, 2, 1)              # (B, S, S)
    p = jax.nn.softmax(scores, axis=1)              # dim=1, as in the module
    Z = p @ V
    return Z * (1.0 / (float(q) ** 0.5))


# ----------------------------- main -----------------------------

if __name__ == "__main__":
    # batch=2, max_seq_length=8, qkv_size=16  ->  flattened feature dim = 128
    B, S, q = 2, 8, 16
    Sq = S * q

    key = jax.random.PRNGKey(0)
    kx, kwq, kbq, kwk, kbk, kwv, kbv = jax.random.split(key, 7)

    x = jax.random.normal(kx, (B, S, q), jnp.float32)

    # torch.nn.Linear default init: U(-1/sqrt(in), 1/sqrt(in)) for W and b.
    bound = 1.0 / (Sq ** 0.5)
    WQ = jax.random.uniform(kwq, (Sq, Sq), jnp.float32, -bound, bound)
    bQ = jax.random.uniform(kbq, (Sq,), jnp.float32, -bound, bound)
    WK = jax.random.uniform(kwk, (Sq, Sq), jnp.float32, -bound, bound)
    bK = jax.random.uniform(kbk, (Sq,), jnp.float32, -bound, bound)
    WV = jax.random.uniform(kwv, (Sq, Sq), jnp.float32, -bound, bound)
    bV = jax.random.uniform(kbv, (Sq,), jnp.float32, -bound, bound)

    w_packed, b_packed = pack_params(WQ, bQ, WK, bK, WV, bV, q)

    z = attention_head(x, w_packed, b_packed, S, q)
    z = jax.block_until_ready(z)
    assert z.shape == (B, S, q) and z.dtype == jnp.float32

    z_ref = jax.block_until_ready(ref_attention_head(x, WQ, bQ, WK, bK, WV, bV, S, q))
    err = float(jnp.max(jnp.abs(z - z_ref)))
    assert err < 1e-2, f"max abs err {err}"
    print("KERNEL_OK")
</pallas_src>

<mosaic_0001>
module attributes {stable_mosaic.version = 11 : i64} {
  func.func @attention_head_kernel(%arg0: i32, %arg1: memref<2x128xf32, #tpu.memory_space<vmem>>, %arg2: memref<128x384xf32, #tpu.memory_space<vmem>>, %arg3: memref<1x384xf32, #tpu.memory_space<vmem>>, %arg4: memref<2x128xf32, #tpu.memory_space<vmem>>, %arg5: memref<2x8x16xf32, #tpu.memory_space<vmem>>, %arg6: memref<2x8x16xf32, #tpu.memory_space<vmem>>, %arg7: memref<2x8x16xf32, #tpu.memory_space<vmem>>) attributes {dimension_semantics = [#tpu.dimension_semantics<parallel>], iteration_bounds = array<i64: 1>, scalar_prefetch = 0 : i64, scratch_operands = 3 : i64, tpu.core_type = #tpu.core_type<tc>, window_params = [{transform_indices = @transform_0, window_bounds = array<i64: 2, 128>}, {pipeline_mode = #tpu.pipeline_mode<synchronous>, transform_indices = @transform_1, window_bounds = array<i64: 128, 384>}, {pipeline_mode = #tpu.pipeline_mode<synchronous>, transform_indices = @transform_2, window_bounds = array<i64: 1, 384>}, {transform_indices = @transform_3, window_bounds = array<i64: 2, 128>}]} {
    %c0 = arith.constant 0 : index
    %c0_0 = arith.constant 0 : index
    %0 = vector.load %arg1[%c0, %c0_0] : memref<2x128xf32, #tpu.memory_space<vmem>>, vector<2x128xf32>
    %c0_1 = arith.constant 0 : index
    %c0_2 = arith.constant 0 : index
    %1 = vector.load %arg2[%c0_1, %c0_2] : memref<128x384xf32, #tpu.memory_space<vmem>>, vector<128x384xf32>
    %cst = arith.constant dense<0.000000e+00> : vector<2x384xf32>
    %2 = tpu.matmul %0, %1, %cst {dimension_numbers = #tpu.dot_dimension_numbers<[1], [0], [0], [1], [0, 0, 1, 1], [], []>} : vector<2x128xf32>, vector<128x384xf32>, vector<2x384xf32> -> vector<2x384xf32>
    %c0_3 = arith.constant 0 : index
    %c0_4 = arith.constant 0 : index
    %3 = vector.load %arg3[%c0_3, %c0_4] : memref<1x384xf32, #tpu.memory_space<vmem>>, vector<1x384xf32>
    %4 = vector.broadcast %3 : vector<1x384xf32> to vector<2x384xf32>
    %5 = arith.addf %2, %4 : vector<2x384xf32>
    %6 = vector.extract_strided_slice %5 {offsets = [0, 0], sizes = [2, 16], strides = [1, 1]} : vector<2x384xf32> to vector<2x16xf32>
    %c0_5 = arith.constant 0 : index
    %c0_6 = arith.constant 0 : index
    %c0_7 = arith.constant 0 : index
    %7 = vector.load %arg5[%c0_5, %c0_6, %c0_7] : memref<2x8x16xf32, #tpu.memory_space<vmem>>, vector<2x1x16xf32>
    %8 = vector.shape_cast %7 : vector<2x1x16xf32> to vector<2x16xf32>
    %9 = vector.shape_cast %6 : vector<2x16xf32> to vector<2x1x16xf32>
    tpu.vector_store %arg5[%c0_5, %c0_6, %c0_7], %9 {strides = array<i32>} : memref<2x8x16xf32, #tpu.memory_space<vmem>>, vector<2x1x16xf32>,
    %10 = vector.extract_strided_slice %5 {offsets = [0, 128], sizes = [2, 16], strides = [1, 1]} : vector<2x384xf32> to vector<2x16xf32>
    %c0_8 = arith.constant 0 : index
    %c0_9 = arith.constant 0 : index
    %c0_10 = arith.constant 0 : index
    %11 = vector.load %arg6[%c0_8, %c0_9, %c0_10] : memref<2x8x16xf32, #tpu.memory_space<vmem>>, vector<2x1x16xf32>
    %12 = vector.shape_cast %11 : vector<2x1x16xf32> to vector<2x16xf32>
    %13 = vector.shape_cast %10 : vector<2x16xf32> to vector<2x1x16xf32>
    tpu.vector_store %arg6[%c0_8, %c0_9, %c0_10], %13 {strides = array<i32>} : memref<2x8x16xf32, #tpu.memory_space<vmem>>, vector<2x1x16xf32>,
    %14 = vector.extract_strided_slice %5 {offsets = [0, 256], sizes = [2, 16], strides = [1, 1]} : vector<2x384xf32> to vector<2x16xf32>
    %c0_11 = arith.constant 0 : index
    %c0_12 = arith.constant 0 : index
    %c0_13 = arith.constant 0 : index
    %15 = vector.load %arg7[%c0_11, %c0_12, %c0_13] : memref<2x8x16xf32, #tpu.memory_space<vmem>>, vector<2x1x16xf32>
    %16 = vector.shape_cast %15 : vector<2x1x16xf32> to vector<2x16xf32>
    %17 = vector.shape_cast %14 : vector<2x16xf32> to vector<2x1x16xf32>
    tpu.vector_store %arg7[%c0_11, %c0_12, %c0_13], %17 {strides = array<i32>} : memref<2x8x16xf32, #tpu.memory_space<vmem>>, vector<2x1x16xf32>,
    %18 = vector.extract_strided_slice %5 {offsets = [0, 16], sizes = [2, 16], strides = [1, 1]} : vector<2x384xf32> to vector<2x16xf32>
    %c0_14 = arith.constant 0 : index
    %c1 = arith.constant 1 : index
    %c0_15 = arith.constant 0 : index
    %19 = vector.load %arg5[%c0_14, %c1, %c0_15] : memref<2x8x16xf32, #tpu.memory_space<vmem>>, vector<2x1x16xf32>
    %20 = vector.shape_cast %19 : vector<2x1x16xf32> to vector<2x16xf32>
    %21 = vector.shape_cast %18 : vector<2x16xf32> to vector<2x1x16xf32>
    tpu.vector_store %arg5[%c0_14, %c1, %c0_15], %21 {strides = array<i32>} : memref<2x8x16xf32, #tpu.memory_space<vmem>>, vector<2x1x16xf32>,
    %22 = vector.extract_strided_slice %5 {offsets = [0, 144], sizes = [2, 16], strides = [1, 1]} : vector<2x384xf32> to vector<2x16xf32>
    %c0_16 = arith.constant 0 : index
    %c1_17 = arith.constant 1 : index
    %c0_18 = arith.constant 0 : index
    %23 = vector.load %arg6[%c0_16, %c1_17, %c0_18] : memref<2x8x16xf32, #tpu.memory_space<vmem>>, vector<2x1x16xf32>
    %24 = vector.shape_cast %23 : vector<2x1x16xf32> to vector<2x16xf32>
    %25 = vector.shape_cast %22 : vector<2x16xf32> to vector<2x1x16xf32>
    tpu.vector_store %arg6[%c0_16, %c1_17, %c0_18], %25 {strides = array<i32>} : memref<2x8x16xf32, #tpu.memory_space<vmem>>, vector<2x1x16xf32>,
    %26 = vector.extract_strided_slice %5 {offsets = [0, 272], sizes = [2, 16], strides = [1, 1]} : vector<2x384xf32> to vector<2x16xf32>
    %c0_19 = arith.constant 0 : index
    %c1_20 = arith.constant 1 : index
    %c0_21 = arith.constant 0 : index
    %27 = vector.load %arg7[%c0_19, %c1_20, %c0_21] : memref<2x8x16xf32, #tpu.memory_space<vmem>>, vector<2x1x16xf32>
    %28 = vector.shape_cast %27 : vector<2x1x16xf32> to vector<2x16xf32>
    %29 = vector.shape_cast %26 : vector<2x16xf32> to vector<2x1x16xf32>
    tpu.vector_store %arg7[%c0_19, %c1_20, %c0_21], %29 {strides = array<i32>} : memref<2x8x16xf32, #tpu.memory_space<vmem>>, vector<2x1x16xf32>,
    %30 = vector.extract_strided_slice %5 {offsets = [0, 32], sizes = [2, 16], strides = [1, 1]} : vector<2x384xf32> to vector<2x16xf32>
    %c0_22 = arith.constant 0 : index
    %c2 = arith.constant 2 : index
    %c0_23 = arith.constant 0 : index
    %31 = vector.load %arg5[%c0_22, %c2, %c0_23] : memref<2x8x16xf32, #tpu.memory_space<vmem>>, vector<2x1x16xf32>
    %32 = vector.shape_cast %31 : vector<2x1x16xf32> to vector<2x16xf32>
    %33 = vector.shape_cast %30 : vector<2x16xf32> to vector<2x1x16xf32>
    tpu.vector_store %arg5[%c0_22, %c2, %c0_23], %33 {strides = array<i32>} : memref<2x8x16xf32, #tpu.memory_space<vmem>>, vector<2x1x16xf32>,
    %34 = vector.extract_strided_slice %5 {offsets = [0, 160], sizes = [2, 16], strides = [1, 1]} : vector<2x384xf32> to vector<2x16xf32>
    %c0_24 = arith.constant 0 : index
    %c2_25 = arith.constant 2 : index
    %c0_26 = arith.constant 0 : index
    %35 = vector.load %arg6[%c0_24, %c2_25, %c0_26] : memref<2x8x16xf32, #tpu.memory_space<vmem>>, vector<2x1x16xf32>
    %36 = vector.shape_cast %35 : vector<2x1x16xf32> to vector<2x16xf32>
    %37 = vector.shape_cast %34 : vector<2x16xf32> to vector<2x1x16xf32>
    tpu.vector_store %arg6[%c0_24, %c2_25, %c0_26], %37 {strides = array<i32>} : memref<2x8x16xf32, #tpu.memory_space<vmem>>, vector<2x1x16xf32>,
    %38 = vector.extract_strided_slice %5 {offsets = [0, 288], sizes = [2, 16], strides = [1, 1]} : vector<2x384xf32> to vector<2x16xf32>
    %c0_27 = arith.constant 0 : index
    %c2_28 = arith.constant 2 : index
    %c0_29 = arith.constant 0 : index
    %39 = vector.load %arg7[%c0_27, %c2_28, %c0_29] : memref<2x8x16xf32, #tpu.memory_space<vmem>>, vector<2x1x16xf32>
    %40 = vector.shape_cast %39 : vector<2x1x16xf32> to vector<2x16xf32>
    %41 = vector.shape_cast %38 : vector<2x16xf32> to vector<2x1x16xf32>
    tpu.vector_store %arg7[%c0_27, %c2_28, %c0_29], %41 {strides = array<i32>} : memref<2x8x16xf32, #tpu.memory_space<vmem>>, vector<2x1x16xf32>,
    %42 = vector.extract_strided_slice %5 {offsets = [0, 48], sizes = [2, 16], strides = [1, 1]} : vector<2x384xf32> to vector<2x16xf32>
    %c0_30 = arith.constant 0 : index
    %c3 = arith.constant 3 : index
    %c0_31 = arith.constant 0 : index
    %43 = vector.load %arg5[%c0_30, %c3, %c0_31] : memref<2x8x16xf32, #tpu.memory_space<vmem>>, vector<2x1x16xf32>
    %44 = vector.shape_cast %43 : vector<2x1x16xf32> to vector<2x16xf32>
    %45 = vector.shape_cast %42 : vector<2x16xf32> to vector<2x1x16xf32>
    tpu.vector_store %arg5[%c0_30, %c3, %c0_31], %45 {strides = array<i32>} : memref<2x8x16xf32, #tpu.memory_space<vmem>>, vector<2x1x16xf32>,
    %46 = vector.extract_strided_slice %5 {offsets = [0, 176], sizes = [2, 16], strides = [1, 1]} : vector<2x384xf32> to vector<2x16xf32>
    %c0_32 = arith.constant 0 : index
    %c3_33 = arith.constant 3 : index
    %c0_34 = arith.constant 0 : index
    %47 = vector.load %arg6[%c0_32, %c3_33, %c0_34] : memref<2x8x16xf32, #tpu.memory_space<vmem>>, vector<2x1x16xf32>
    %48 = vector.shape_cast %47 : vector<2x1x16xf32> to vector<2x16xf32>
    %49 = vector.shape_cast %46 : vector<2x16xf32> to vector<2x1x16xf32>
    tpu.vector_store %arg6[%c0_32, %c3_33, %c0_34], %49 {strides = array<i32>} : memref<2x8x16xf32, #tpu.memory_space<vmem>>, vector<2x1x16xf32>,
    %50 = vector.extract_strided_slice %5 {offsets = [0, 304], sizes = [2, 16], strides = [1, 1]} : vector<2x384xf32> to vector<2x16xf32>
    %c0_35 = arith.constant 0 : index
    %c3_36 = arith.constant 3 : index
    %c0_37 = arith.constant 0 : index
    %51 = vector.load %arg7[%c0_35, %c3_36, %c0_37] : memref<2x8x16xf32, #tpu.memory_space<vmem>>, vector<2x1x16xf32>
    %52 = vector.shape_cast %51 : vector<2x1x16xf32> to vector<2x16xf32>
    %53 = vector.shape_cast %50 : vector<2x16xf32> to vector<2x1x16xf32>
    tpu.vector_store %arg7[%c0_35, %c3_36, %c0_37], %53 {strides = array<i32>} : memref<2x8x16xf32, #tpu.memory_space<vmem>>, vector<2x1x16xf32>,
    %54 = vector.extract_strided_slice %5 {offsets = [0, 64], sizes = [2, 16], strides = [1, 1]} : vector<2x384xf32> to vector<2x16xf32>
    %c0_38 = arith.constant 0 : index
    %c4 = arith.constant 4 : index
    %c0_39 = arith.constant 0 : index
    %55 = vector.load %arg5[%c0_38, %c4, %c0_39] : memref<2x8x16xf32, #tpu.memory_space<vmem>>, vector<2x1x16xf32>
    %56 = vector.shape_cast %55 : vector<2x1x16xf32> to vector<2x16xf32>
    %57 = vector.shape_cast %54 : vector<2x16xf32> to vector<2x1x16xf32>
    tpu.vector_store %arg5[%c0_38, %c4, %c0_39], %57 {strides = array<i32>} : memref<2x8x16xf32, #tpu.memory_space<vmem>>, vector<2x1x16xf32>,
    %58 = vector.extract_strided_slice %5 {offsets = [0, 192], sizes = [2, 16], strides = [1, 1]} : vector<2x384xf32> to vector<2x16xf32>
    %c0_40 = arith.constant 0 : index
    %c4_41 = arith.constant 4 : index
    %c0_42 = arith.constant 0 : index
    %59 = vector.load %arg6[%c0_40, %c4_41, %c0_42] : memref<2x8x16xf32, #tpu.memory_space<vmem>>, vector<2x1x16xf32>
    %60 = vector.shape_cast %59 : vector<2x1x16xf32> to vector<2x16xf32>
    %61 = vector.shape_cast %58 : vector<2x16xf32> to vector<2x1x16xf32>
    tpu.vector_store %arg6[%c0_40, %c4_41, %c0_42], %61 {strides = array<i32>} : memref<2x8x16xf32, #tpu.memory_space<vmem>>, vector<2x1x16xf32>,
    %62 = vector.extract_strided_slice %5 {offsets = [0, 320], sizes = [2, 16], strides = [1, 1]} : vector<2x384xf32> to vector<2x16xf32>
    %c0_43 = arith.constant 0 : index
    %c4_44 = arith.constant 4 : index
    %c0_45 = arith.constant 0 : index
    %63 = vector.load %arg7[%c0_43, %c4_44, %c0_45] : memref<2x8x16xf32, #tpu.memory_space<vmem>>, vector<2x1x16xf32>
    %64 = vector.shape_cast %63 : vector<2x1x16xf32> to vector<2x16xf32>
    %65 = vector.shape_cast %62 : vector<2x16xf32> to vector<2x1x16xf32>
    tpu.vector_store %arg7[%c0_43, %c4_44, %c0_45], %65 {strides = array<i32>} : memref<2x8x16xf32, #tpu.memory_space<vmem>>, vector<2x1x16xf32>,
    %66 = vector.extract_strided_slice %5 {offsets = [0, 80], sizes = [2, 16], strides = [1, 1]} : vector<2x384xf32> to vector<2x16xf32>
    %c0_46 = arith.constant 0 : index
    %c5 = arith.constant 5 : index
    %c0_47 = arith.constant 0 : index
    %67 = vector.load %arg5[%c0_46, %c5, %c0_47] : memref<2x8x16xf32, #tpu.memory_space<vmem>>, vector<2x1x16xf32>
    %68 = vector.shape_cast %67 : vector<2x1x16xf32> to vector<2x16xf32>
    %69 = vector.shape_cast %66 : vector<2x16xf32> to vector<2x1x16xf32>
    tpu.vector_store %arg5[%c0_46, %c5, %c0_47], %69 {strides = array<i32>} : memref<2x8x16xf32, #tpu.memory_space<vmem>>, vector<2x1x16xf32>,
    %70 = vector.extract_strided_slice %5 {offsets = [0, 208], sizes = [2, 16], strides = [1, 1]} : vector<2x384xf32> to vector<2x16xf32>
    %c0_48 = arith.constant 0 : index
    %c5_49 = arith.constant 5 : index
    %c0_50 = arith.constant 0 : index
    %71 = vector.load %arg6[%c0_48, %c5_49, %c0_50] : memref<2x8x16xf32, #tpu.memory_space<vmem>>, vector<2x1x16xf32>
    %72 = vector.shape_cast %71 : vector<2x1x16xf32> to vector<2x16xf32>
    %73 = vector.shape_cast %70 : vector<2x16xf32> to vector<2x1x16xf32>
    tpu.vector_store %arg6[%c0_48, %c5_49, %c0_50], %73 {strides = array<i32>} : memref<2x8x16xf32, #tpu.memory_space<vmem>>, vector<2x1x16xf32>,
    %74 = vector.extract_strided_slice %5 {offsets = [0, 336], sizes = [2, 16], strides = [1, 1]} : vector<2x384xf32> to vector<2x16xf32>
    %c0_51 = arith.constant 0 : index
    %c5_52 = arith.constant 5 : index
    %c0_53 = arith.constant 0 : index
    %75 = vector.load %arg7[%c0_51, %c5_52, %c0_53] : memref<2x8x16xf32, #tpu.memory_space<vmem>>, vector<2x1x16xf32>
    %76 = vector.shape_cast %75 : vector<2x1x16xf32> to vector<2x16xf32>
    %77 = vector.shape_cast %74 : vector<2x16xf32> to vector<2x1x16xf32>
    tpu.vector_store %arg7[%c0_51, %c5_52, %c0_53], %77 {strides = array<i32>} : memref<2x8x16xf32, #tpu.memory_space<vmem>>, vector<2x1x16xf32>,
    %78 = vector.extract_strided_slice %5 {offsets = [0, 96], sizes = [2, 16], strides = [1, 1]} : vector<2x384xf32> to vector<2x16xf32>
    %c0_54 = arith.constant 0 : index
    %c6 = arith.constant 6 : index
    %c0_55 = arith.constant 0 : index
    %79 = vector.load %arg5[%c0_54, %c6, %c0_55] : memref<2x8x16xf32, #tpu.memory_space<vmem>>, vector<2x1x16xf32>
    %80 = vector.shape_cast %79 : vector<2x1x16xf32> to vector<2x16xf32>
    %81 = vector.shape_cast %78 : vector<2x16xf32> to vector<2x1x16xf32>
    tpu.vector_store %arg5[%c0_54, %c6, %c0_55], %81 {strides = array<i32>} : memref<2x8x16xf32, #tpu.memory_space<vmem>>, vector<2x1x16xf32>,
    %82 = vector.extract_strided_slice %5 {offsets = [0, 224], sizes = [2, 16], strides = [1, 1]} : vector<2x384xf32> to vector<2x16xf32>
    %c0_56 = arith.constant 0 : index
    %c6_57 = arith.constant 6 : index
    %c0_58 = arith.constant 0 : index
    %83 = vector.load %arg6[%c0_56, %c6_57, %c0_58] : memref<2x8x16xf32, #tpu.memory_space<vmem>>, vector<2x1x16xf32>
    %84 = vector.shape_cast %83 : vector<2x1x16xf32> to vector<2x16xf32>
    %85 = vector.shape_cast %82 : vector<2x16xf32> to vector<2x1x16xf32>
    tpu.vector_store %arg6[%c0_56, %c6_57, %c0_58], %85 {strides = array<i32>} : memref<2x8x16xf32, #tpu.memory_space<vmem>>, vector<2x1x16xf32>,
    %86 = vector.extract_strided_slice %5 {offsets = [0, 352], sizes = [2, 16], strides = [1, 1]} : vector<2x384xf32> to vector<2x16xf32>
    %c0_59 = arith.constant 0 : index
    %c6_60 = arith.constant 6 : index
    %c0_61 = arith.constant 0 : index
    %87 = vector.load %arg7[%c0_59, %c6_60, %c0_61] : memref<2x8x16xf32, #tpu.memory_space<vmem>>, vector<2x1x16xf32>
    %88 = vector.shape_cast %87 : vector<2x1x16xf32> to vector<2x16xf32>
    %89 = vector.shape_cast %86 : vector<2x16xf32> to vector<2x1x16xf32>
    tpu.vector_store %arg7[%c0_59, %c6_60, %c0_61], %89 {strides = array<i32>} : memref<2x8x16xf32, #tpu.memory_space<vmem>>, vector<2x1x16xf32>,
    %90 = vector.extract_strided_slice %5 {offsets = [0, 112], sizes = [2, 16], strides = [1, 1]} : vector<2x384xf32> to vector<2x16xf32>
    %c0_62 = arith.constant 0 : index
    %c7 = arith.constant 7 : index
    %c0_63 = arith.constant 0 : index
    %91 = vector.load %arg5[%c0_62, %c7, %c0_63] : memref<2x8x16xf32, #tpu.memory_space<vmem>>, vector<2x1x16xf32>
    %92 = vector.shape_cast %91 : vector<2x1x16xf32> to vector<2x16xf32>
    %93 = vector.shape_cast %90 : vector<2x16xf32> to vector<2x1x16xf32>
    tpu.vector_store %arg5[%c0_62, %c7, %c0_63], %93 {strides = array<i32>} : memref<2x8x16xf32, #tpu.memory_space<vmem>>, vector<2x1x16xf32>,
    %94 = vector.extract_strided_slice %5 {offsets = [0, 240], sizes = [2, 16], strides = [1, 1]} : vector<2x384xf32> to vector<2x16xf32>
    %c0_64 = arith.constant 0 : index
    %c7_65 = arith.constant 7 : index
    %c0_66 = arith.constant 0 : index
    %95 = vector.load %arg6[%c0_64, %c7_65, %c0_66] : memref<2x8x16xf32, #tpu.memory_space<vmem>>, vector<2x1x16xf32>
    %96 = vector.shape_cast %95 : vector<2x1x16xf32> to vector<2x16xf32>
    %97 = vector.shape_cast %94 : vector<2x16xf32> to vector<2x1x16xf32>
    tpu.vector_store %arg6[%c0_64, %c7_65, %c0_66], %97 {strides = array<i32>} : memref<2x8x16xf32, #tpu.memory_space<vmem>>, vector<2x1x16xf32>,
    %98 = vector.extract_strided_slice %5 {offsets = [0, 368], sizes = [2, 16], strides = [1, 1]} : vector<2x384xf32> to vector<2x16xf32>
    %c0_67 = arith.constant 0 : index
    %c7_68 = arith.constant 7 : index
    %c0_69 = arith.constant 0 : index
    %99 = vector.load %arg7[%c0_67, %c7_68, %c0_69] : memref<2x8x16xf32, #tpu.memory_space<vmem>>, vector<2x1x16xf32>
    %100 = vector.shape_cast %99 : vector<2x1x16xf32> to vector<2x16xf32>
    %101 = vector.shape_cast %98 : vector<2x16xf32> to vector<2x1x16xf32>
    tpu.vector_store %arg7[%c0_67, %c7_68, %c0_69], %101 {strides = array<i32>} : memref<2x8x16xf32, #tpu.memory_space<vmem>>, vector<2x1x16xf32>,
    %c0_70 = arith.constant 0 : index
    %c0_71 = arith.constant 0 : index
    %c0_72 = arith.constant 0 : index
    %102 = vector.load %arg5[%c0_70, %c0_71, %c0_72] : memref<2x8x16xf32, #tpu.memory_space<vmem>>, vector<2x8x16xf32>
    %c0_73 = arith.constant 0 : index
    %c0_74 = arith.constant 0 : index
    %c0_75 = arith.constant 0 : index
    %103 = vector.load %arg6[%c0_73, %c0_74, %c0_75] : memref<2x8x16xf32, #tpu.memory_space<vmem>>, vector<2x8x16xf32>
    %c0_76 = arith.constant 0 : index
    %c0_77 = arith.constant 0 : index
    %c0_78 = arith.constant 0 : index
    %104 = vector.load %arg7[%c0_76, %c0_77, %c0_78] : memref<2x8x16xf32, #tpu.memory_space<vmem>>, vector<2x8x16xf32>
    "tpu.trace_start"() <{level = 10 : i32, message = "bsd,btd->bst"}> : () -> ()
    %cst_79 = arith.constant dense<0.000000e+00> : vector<2x8x8xf32>
    %105 = tpu.matmul %102, %103, %cst_79 {dimension_numbers = #tpu.dot_dimension_numbers<[2], [2], [1], [1], [0, 0, 0, 1, 1, 1], [0], [0]>} : vector<2x8x16xf32>, vector<2x8x16xf32>, vector<2x8x8xf32> -> vector<2x8x8xf32>
    "tpu.trace_stop"() : () -> ()
    %cst_80 = arith.constant dense<0xFF800000> : vector<2x8xf32>
    %106 = vector.multi_reduction <maximumf>, %105, %cst_80 [1] : vector<2x8x8xf32> to vector<2x8xf32>
    %107 = vector.shape_cast %106 : vector<2x8xf32> to vector<2x1x8xf32>
    %108 = vector.broadcast %107 : vector<2x1x8xf32> to vector<2x8x8xf32>
    %109 = arith.subf %105, %108 : vector<2x8x8xf32>
    %110 = math.exp %109 : vector<2x8x8xf32>
    %cst_81 = arith.constant dense<0.000000e+00> : vector<2x8xf32>
    %111 = vector.multi_reduction <add>, %110, %cst_81 [1] : vector<2x8x8xf32> to vector<2x8xf32>
    %112 = vector.shape_cast %111 : vector<2x8xf32> to vector<2x1x8xf32>
    %113 = tpu.reciprocal %112 {approx = true} : vector<2x1x8xf32> -> vector<2x1x8xf32>
    %114 = vector.broadcast %113 : vector<2x1x8xf32> to vector<2x8x8xf32>
    %115 = arith.mulf %110, %114 : vector<2x8x8xf32>
    "tpu.trace_start"() <{level = 10 : i32, message = "bst,btd->bsd"}> : () -> ()
    %cst_82 = arith.constant dense<0.000000e+00> : vector<2x8x16xf32>
    %116 = tpu.matmul %115, %104, %cst_82 {dimension_numbers = #tpu.dot_dimension_numbers<[2], [1], [1], [2], [0, 0, 0, 1, 1, 2], [0], [0]>} : vector<2x8x8xf32>, vector<2x8x16xf32>, vector<2x8x16xf32> -> vector<2x8x16xf32>
    "tpu.trace_stop"() : () -> ()
    %117 = vector.extract_strided_slice %116 {offsets = [0, 0, 0], sizes = [2, 1, 16], strides = [1, 1, 1]} : vector<2x8x16xf32> to vector<2x1x16xf32>
    %118 = vector.shape_cast %117 : vector<2x1x16xf32> to vector<2x16xf32>
    %c0_83 = arith.constant 0 : index
    %c0_84 = arith.constant 0 : index
    %119 = vector.load %arg4[%c0_83, %c0_84] : memref<2x128xf32, #tpu.memory_space<vmem>>, vector<2x16xf32>
    tpu.vector_store %arg4[%c0_83, %c0_84], %118 {strides = array<i32>} : memref<2x128xf32, #tpu.memory_space<vmem>>, vector<2x16xf32>,
    %120 = vector.extract_strided_slice %116 {offsets = [0, 1, 0], sizes = [2, 1, 16], strides = [1, 1, 1]} : vector<2x8x16xf32> to vector<2x1x16xf32>
    %121 = vector.shape_cast %120 : vector<2x1x16xf32> to vector<2x16xf32>
    %c0_85 = arith.constant 0 : index
    %c16 = arith.constant 16 : index
    %122 = vector.load %arg4[%c0_85, %c16] : memref<2x128xf32, #tpu.memory_space<vmem>>, vector<2x16xf32>
    tpu.vector_store %arg4[%c0_85, %c16], %121 {strides = array<i32>} : memref<2x128xf32, #tpu.memory_space<vmem>>, vector<2x16xf32>,
    %123 = vector.extract_strided_slice %116 {offsets = [0, 2, 0], sizes = [2, 1, 16], strides = [1, 1, 1]} : vector<2x8x16xf32> to vector<2x1x16xf32>
    %124 = vector.shape_cast %123 : vector<2x1x16xf32> to vector<2x16xf32>
    %c0_86 = arith.constant 0 : index
    %c32 = arith.constant 32 : index
    %125 = vector.load %arg4[%c0_86, %c32] : memref<2x128xf32, #tpu.memory_space<vmem>>, vector<2x16xf32>
    tpu.vector_store %arg4[%c0_86, %c32], %124 {strides = array<i32>} : memref<2x128xf32, #tpu.memory_space<vmem>>, vector<2x16xf32>,
    %126 = vector.extract_strided_slice %116 {offsets = [0, 3, 0], sizes = [2, 1, 16], strides = [1, 1, 1]} : vector<2x8x16xf32> to vector<2x1x16xf32>
    %127 = vector.shape_cast %126 : vector<2x1x16xf32> to vector<2x16xf32>
    %c0_87 = arith.constant 0 : index
    %c48 = arith.constant 48 : index
    %128 = vector.load %arg4[%c0_87, %c48] : memref<2x128xf32, #tpu.memory_space<vmem>>, vector<2x16xf32>
    tpu.vector_store %arg4[%c0_87, %c48], %127 {strides = array<i32>} : memref<2x128xf32, #tpu.memory_space<vmem>>, vector<2x16xf32>,
    %129 = vector.extract_strided_slice %116 {offsets = [0, 4, 0], sizes = [2, 1, 16], strides = [1, 1, 1]} : vector<2x8x16xf32> to vector<2x1x16xf32>
    %130 = vector.shape_cast %129 : vector<2x1x16xf32> to vector<2x16xf32>
    %c0_88 = arith.constant 0 : index
    %c64 = arith.constant 64 : index
    %131 = vector.load %arg4[%c0_88, %c64] : memref<2x128xf32, #tpu.memory_space<vmem>>, vector<2x16xf32>
    tpu.vector_store %arg4[%c0_88, %c64], %130 {strides = array<i32>} : memref<2x128xf32, #tpu.memory_space<vmem>>, vector<2x16xf32>,
    %132 = vector.extract_strided_slice %116 {offsets = [0, 5, 0], sizes = [2, 1, 16], strides = [1, 1, 1]} : vector<2x8x16xf32> to vector<2x1x16xf32>
    %133 = vector.shape_cast %132 : vector<2x1x16xf32> to vector<2x16xf32>
    %c0_89 = arith.constant 0 : index
    %c80 = arith.constant 80 : index
    %134 = vector.load %arg4[%c0_89, %c80] : memref<2x128xf32, #tpu.memory_space<vmem>>, vector<2x16xf32>
    tpu.vector_store %arg4[%c0_89, %c80], %133 {strides = array<i32>} : memref<2x128xf32, #tpu.memory_space<vmem>>, vector<2x16xf32>,
    %135 = vector.extract_strided_slice %116 {offsets = [0, 6, 0], sizes = [2, 1, 16], strides = [1, 1, 1]} : vector<2x8x16xf32> to vector<2x1x16xf32>
    %136 = vector.shape_cast %135 : vector<2x1x16xf32> to vector<2x16xf32>
    %c0_90 = arith.constant 0 : index
    %c96 = arith.constant 96 : index
    %137 = vector.load %arg4[%c0_90, %c96] : memref<2x128xf32, #tpu.memory_space<vmem>>, vector<2x16xf32>
    tpu.vector_store %arg4[%c0_90, %c96], %136 {strides = array<i32>} : memref<2x128xf32, #tpu.memory_space<vmem>>, vector<2x16xf32>,
    %138 = vector.extract_strided_slice %116 {offsets = [0, 7, 0], sizes = [2, 1, 16], strides = [1, 1, 1]} : vector<2x8x16xf32> to vector<2x1x16xf32>
    %139 = vector.shape_cast %138 : vector<2x1x16xf32> to vector<2x16xf32>
    %c0_91 = arith.constant 0 : index
    %c112 = arith.constant 112 : index
    %140 = vector.load %arg4[%c0_91, %c112] : memref<2x128xf32, #tpu.memory_space<vmem>>, vector<2x16xf32>
    tpu.vector_store %arg4[%c0_91, %c112], %139 {strides = array<i32>} : memref<2x128xf32, #tpu.memory_space<vmem>>, vector<2x16xf32>,
    return
  }
  func.func @transform_0(%arg0: i32) -> (i32, i32) {
    %c0_i32 = arith.constant 0 : i32
    %c0_i32_0 = arith.constant 0 : i32
    return %arg0, %c0_i32 : i32, i32
  }
  func.func @transform_1(%arg0: i32) -> (i32, i32) {
    %c0_i32 = arith.constant 0 : i32
    %c0_i32_0 = arith.constant 0 : i32
    %c0_i32_1 = arith.constant 0 : i32
    return %c0_i32, %c0_i32_0 : i32, i32
  }
  func.func @transform_2(%arg0: i32) -> (i32, i32) {
    %c0_i32 = arith.constant 0 : i32
    %c0_i32_0 = arith.constant 0 : i32
    %c0_i32_1 = arith.constant 0 : i32
    return %c0_i32, %c0_i32_0 : i32, i32
  }
  func.func @transform_3(%arg0: i32) -> (i32, i32) {
    %c0_i32 = arith.constant 0 : i32
    %c0_i32_0 = arith.constant 0 : i32
    return %arg0, %c0_i32 : i32, i32
  }
}

</mosaic_0001>

<llo_original>
// kernel: tpu_custom_call.1
$region0: #{tpu_custom_call.1}
  #allocation0 [shape = 'u32[]', space=smem, size = 0x4, offset = 0x4, fixed_abs, tag = 'smem constant byte address 0x4 - core index']
  #allocation1 [shape = 'u32[144,128]{1,0:T(1,128)}', space=vmem, size = 0x12000, scoped, tag = 'internal scratch']
  #allocation2 [shape = 'f32[2,8,16]{2,1,0:T(8,128)}', space=vmem, size = 0x2000, scoped, tag = 'scratch operand']
  #allocation3 [shape = 'f32[2,8,16]{2,1,0:T(8,128)}', space=vmem, size = 0x2000, scoped, tag = 'scratch operand']
  #allocation4 [shape = 'f32[2,8,16]{2,1,0:T(8,128)}', space=vmem, size = 0x2000, scoped, tag = 'scratch operand']
  %s0 = inlined_call_operand.hbm [shape: f32[2,128], index: 0, kind: input, shape index: {}]
  %s1 = inlined_call_operand.hbm [shape: f32[128,384], index: 1, kind: input, shape index: {}]
  %s2 = inlined_call_operand.vmem [shape: f32[1,384], index: 2, kind: input, shape index: {}]
  %s3 = inlined_call_operand.hbm [shape: f32[2,128], index: 3, kind: output, shape index: {}]
  %s4 = sld [smem:[#allocation0]]
  $region30: #{tpu_custom_call.1} parent=0
    _
  %s6 = ssub.s32 1, %s4
  %s7 = scalar_select 0, %s6, %s4
  $region1: #{tpu_custom_call.1} parent=0
    #allocation5 [shape = 'u8[1024]{0}', space=vmem, size = 0x400, scoped, tag = 'input window, operand 0, single buffered']
    #allocation6 [shape = 's32[1]{0}', space=sflag, size = 0x4, scoped, tag = 'scoped memory for tpu_custom_call.1']
    #allocation7 [shape = 's32[1]{0}', space=sflag, size = 0x4, scoped, tag = 'scoped memory for tpu_custom_call.1']
    #allocation8 [shape = 'u8[196608]{0}', space=vmem, size = 0x30000, scoped, tag = 'input window, operand 1, single buffered']
    #allocation9 [shape = 's32[1]{0}', space=sflag, size = 0x4, scoped, tag = 'scoped memory for tpu_custom_call.1']
    #allocation10 [shape = 'u8[1024]{0}', space=vmem, size = 0x400, scoped, tag = 'output window, operand 0, single buffered']
    %8 = vsyncpa [#allocation6], 0
    %9 = vsyncpa [#allocation9], 0
    %10 = vsyncpa [#allocation7], 0
    // Predicated region
    $region2: #{tpu_custom_call.1} parent=1 // pred_check
      _
    $region3: #{tpu_custom_call.1} parent=1 // pred_check_branch
      %12 = sbr.rel (0) target = $region5
    $region4: #{tpu_custom_call.1} parent=1 // pred_region
      %s14 = ssub.s32 32, 32
      %15 = vsyncadd [#allocation6], %s14
      %s17 = sshll.u32 [#allocation5], 4
      %s18 = int_to_ptr.vmem [resolvable:$true] %s17
      %20 = dma.hbm_to_vmem [thread:$0]  %s0, 32, %s18, [#allocation6]
    $region5: #{tpu_custom_call.1} parent=1 // pred_fallthru
      _
    // Predicated region
    $region6: #{tpu_custom_call.1} parent=1 // pred_check
      _
    $region7: #{tpu_custom_call.1} parent=1 // pred_check_branch
      %22 = sbr.rel (0) target = $region9
    $region8: #{tpu_custom_call.1} parent=1 // pred_region
      %s24 = ssub.s32 6144, 6144
      %25 = vsyncadd [#allocation9], %s24
      %s26 = sshll.u32 [#allocation8], 4
      %s27 = int_to_ptr.vmem [resolvable:$true] %s26
      %32 = dma.hbm_to_vmem [thread:$0]  %s1, 6144, %s27, [#allocation9], 384, 384, 24
    $region9: #{tpu_custom_call.1} parent=1 // pred_fallthru
      _
    // Predicated region
    $region10: #{tpu_custom_call.1} parent=1 // pred_check
      _
    $region11: #{tpu_custom_call.1} parent=1 // pred_check_branch
      %34 = sbr.rel (0) target = $region13
    $region12: #{tpu_custom_call.1} parent=1 // pred_region
      _
    $region13: #{tpu_custom_call.1} parent=1 // pred_fallthru
      _
    // Predicated region
    $region14: #{tpu_custom_call.1} parent=1 // pred_check
      _
    $region15: #{tpu_custom_call.1} parent=1 // pred_check_branch
      %36 = sbr.rel (0) target = $region17
    $region16: #{tpu_custom_call.1} parent=1 // pred_region
      %37 = dma.done [#allocation6], 32
    $region17: #{tpu_custom_call.1} parent=1 // pred_fallthru
      _
    // Predicated region
    $region18: #{tpu_custom_call.1} parent=1 // pred_check
      _
    $region19: #{tpu_custom_call.1} parent=1 // pred_check_branch
      %39 = sbr.rel (0) target = $region21
    $region20: #{tpu_custom_call.1} parent=1 // pred_region
      %40 = dma.done [#allocation9], 6144
    $region21: #{tpu_custom_call.1} parent=1 // pred_fallthru
      _
    %v41 = vld [vmem:[#allocation5] sm:$0x3]
    %v42 = vld [vmem:[#allocation8] sm:$0xff]
    %v43 = vld [vmem:[#allocation8 + $0x8] sm:$0xff]
    %v44 = vld [vmem:[#allocation8 + $0x10] sm:$0xff]
    %v45 = vld [vmem:[#allocation8 + $0x18] sm:$0xff]
    %v46 = vld [vmem:[#allocation8 + $0x20] sm:$0xff]
    %v47 = vld [vmem:[#allocation8 + $0x28] sm:$0xff]
    %v48 = vld [vmem:[#allocation8 + $0x30] sm:$0xff]
    %v49 = vld [vmem:[#allocation8 + $0x38] sm:$0xff]
    %v50 = vld [vmem:[#allocation8 + $0x40] sm:$0xff]
    %v51 = vld [vmem:[#allocation8 + $0x48] sm:$0xff]
    %v52 = vld [vmem:[#allocation8 + $0x50] sm:$0xff]
    %v53 = vld [vmem:[#allocation8 + $0x58] sm:$0xff]
    %v54 = vld [vmem:[#allocation8 + $0x60] sm:$0xff]
    %v55 = vld [vmem:[#allocation8 + $0x68] sm:$0xff]
    %v56 = vld [vmem:[#allocation8 + $0x70] sm:$0xff]
    %v57 = vld [vmem:[#allocation8 + $0x78] sm:$0xff]
    %v58 = vld [vmem:[#allocation8 + $0x80] sm:$0xff]
    %v59 = vld [vmem:[#allocation8 + $0x88] sm:$0xff]
    %v60 = vld [vmem:[#allocation8 + $0x90] sm:$0xff]
    %v61 = vld [vmem:[#allocation8 + $0x98] sm:$0xff]
    %v62 = vld [vmem:[#allocation8 + $0xa0] sm:$0xff]
    %v63 = vld [vmem:[#allocation8 + $0xa8] sm:$0xff]
    %v64 = vld [vmem:[#allocation8 + $0xb0] sm:$0xff]
    %v65 = vld [vmem:[#allocation8 + $0xb8] sm:$0xff]
    %v66 = vld [vmem:[#allocation8 + $0xc0] sm:$0xff]
    %v67 = vld [vmem:[#allocation8 + $0xc8] sm:$0xff]
    %v68 = vld [vmem:[#allocation8 + $0xd0] sm:$0xff]
    %v69 = vld [vmem:[#allocation8 + $0xd8] sm:$0xff]
    %v70 = vld [vmem:[#allocation8 + $0xe0] sm:$0xff]
    %v71 = vld [vmem:[#allocation8 + $0xe8] sm:$0xff]
    %v72 = vld [vmem:[#allocation8 + $0xf0] sm:$0xff]
    %v73 = vld [vmem:[#allocation8 + $0xf8] sm:$0xff]
    %v74 = vld [vmem:[#allocation8 + $0x100] sm:$0xff]
    %v75 = vld [vmem:[#allocation8 + $0x108] sm:$0xff]
    %v76 = vld [vmem:[#allocation8 + $0x110] sm:$0xff]
    %v77 = vld [vmem:[#allocation8 + $0x118] sm:$0xff]
    %v78 = vld [vmem:[#allocation8 + $0x120] sm:$0xff]
    %v79 = vld [vmem:[#allocation8 + $0x128] sm:$0xff]
    %v80 = vld [vmem:[#allocation8 + $0x130] sm:$0xff]
    %v81 = vld [vmem:[#allocation8 + $0x138] sm:$0xff]
    %v82 = vld [vmem:[#allocation8 + $0x140] sm:$0xff]
    %v83 = vld [vmem:[#allocation8 + $0x148] sm:$0xff]
    %v84 = vld [vmem:[#allocation8 + $0x150] sm:$0xff]
    %v85 = vld [vmem:[#allocation8 + $0x158] sm:$0xff]
    %v86 = vld [vmem:[#allocation8 + $0x160] sm:$0xff]
    %v87 = vld [vmem:[#allocation8 + $0x168] sm:$0xff]
    %v88 = vld [vmem:[#allocation8 + $0x170] sm:$0xff]
    %v89 = vld [vmem:[#allocation8 + $0x178] sm:$0xff]
    %v90 = vld [vmem:[%s2] sm:$0x7]
    %v92 = vlaneseq
    %v93 = vshrl.u32 %v92, 7
    %v94 = vsub.s32 0, %v93
    %v95 = vrot.slane %v90, %v94
    %v96 = vlaneseq
    %v97 = vshrl.u32 %v96, 7
    %v98 = vsub.s32 1, %v97
    %v99 = vrot.slane %v90, %v98
    %v100 = vlaneseq
    %v101 = vshrl.u32 %v100, 7
    %v102 = vsub.s32 2, %v101
    %v103 = vrot.slane %v90, %v102
    %107 = vmatprep.subr.mxu0 %v43
    %108 = vmatpush1.msra.mxu0 %v42
    %109 = vmatprep.subr.mxu0 %v46
    %110 = vmatpush1.msra.mxu0 %v45
    %111 = vmatprep.subr.mxu0 %v49
    %112 = vmatpush1.msra.mxu0 %v48
    %113 = vmatprep.subr.mxu0 %v52
    %114 = vmatpush1.msra.mxu0 %v51
    %115 = vmatprep.subr.mxu0 %v55
    %116 = vmatpush1.msra.mxu0 %v54
    %117 = vmatprep.subr.mxu0 %v58
    %118 = vmatpush1.msra.mxu0 %v57
    %119 = vmatprep.subr.mxu0 %v61
    %120 = vmatpush1.msra.mxu0 %v60
    %121 = vmatprep.subr.mxu0 %v64
    %122 = vmatpush1.msra.mxu0 %v63
    %123 = vmatprep.subr.mxu0 %v67
    %124 = vmatpush1.msra.mxu0 %v66
    %125 = vmatprep.subr.mxu0 %v70
    %126 = vmatpush1.msra.mxu0 %v69
    %127 = vmatprep.subr.mxu0 %v73
    %128 = vmatpush1.msra.mxu0 %v72
    %129 = vmatprep.subr.mxu0 %v76
    %130 = vmatpush1.msra.mxu0 %v75
    %131 = vmatprep.subr.mxu0 %v79
    %132 = vmatpush1.msra.mxu0 %v78
    %133 = vmatprep.subr.mxu0 %v82
    %134 = vmatpush1.msra.mxu0 %v81
    %135 = vmatprep.subr.mxu0 %v85
    %136 = vmatpush1.msra.mxu0 %v84
    %137 = vmatprep.subr.mxu0 %v88
    %138 = vmatpush1.msra.mxu0 %v87
    %139 = vmatprep.subr.mxu0 0.0
    %140 = vmatpush1.msra.mxu0 0.0
    %141 = vmatprep.subr.mxu0 0.0
    %142 = vmatpush1.msra.mxu0 0.0
    %143 = vmatprep.subr.mxu0 0.0
    %144 = vmatpush1.msra.mxu0 0.0
    %145 = vmatprep.subr.mxu0 0.0
    %146 = vmatpush1.msra.mxu0 0.0
    %147 = vmatprep.subr.mxu0 0.0
    %148 = vmatpush1.msra.mxu0 0.0
    %149 = vmatprep.subr.mxu0 0.0
    %150 = vmatpush1.msra.mxu0 0.0
    %151 = vmatprep.subr.mxu0 0.0
    %152 = vmatpush1.msra.mxu0 0.0
    %153 = vmatprep.subr.mxu0 0.0
    %154 = vmatpush1.msra.mxu0 0.0
    %155 = vmatprep.subr.mxu0 0.0
    %156 = vmatpush1.msra.mxu0 0.0
    %157 = vmatprep.subr.mxu0 0.0
    %158 = vmatpush1.msra.mxu0 0.0
    %159 = vmatprep.subr.mxu0 0.0
    %160 = vmatpush1.msra.mxu0 0.0
    %161 = vmatprep.subr.mxu0 0.0
    %162 = vmatpush1.msra.mxu0 0.0
    %163 = vmatprep.subr.mxu0 0.0
    %164 = vmatpush1.msra.mxu0 0.0
    %165 = vmatprep.subr.mxu0 0.0
    %166 = vmatpush1.msra.mxu0 0.0
    %167 = vmatprep.subr.mxu0 0.0
    %168 = vmatpush1.msra.mxu0 0.0
    %169 = vmatprep.subr.mxu0 0.0
    %170 = vmatpush1.msra.mxu0 0.0
    %171 = vmatprep.mubr.f32.mxu0 0.0
    %172 = vmatmul.mubr.f32.gmra.mrb[0].mxu0 %v41
    %v173 = vpop.f32.mrb[0].mxu0
    %v174 = vadd.f32 %v95, %v173
    %v175 = vpop.f32.mrb[0].mxu0
    %v176 = vadd.f32 %v99, %v175
    %177 = vdwg.mxu0
    %178 = vmatprep.subr.mxu0 0.0
    %179 = vmatpush1.msra.mxu0 %v44
    %180 = vmatprep.subr.mxu0 0.0
    %181 = vmatpush1.msra.mxu0 %v47
    %182 = vmatprep.subr.mxu0 0.0
    %183 = vmatpush1.msra.mxu0 %v50
    %184 = vmatprep.subr.mxu0 0.0
    %185 = vmatpush1.msra.mxu0 %v53
    %186 = vmatprep.subr.mxu0 0.0
    %187 = vmatpush1.msra.mxu0 %v56
    %188 = vmatprep.subr.mxu0 0.0
    %189 = vmatpush1.msra.mxu0 %v59
    %190 = vmatprep.subr.mxu0 0.0
    %191 = vmatpush1.msra.mxu0 %v62
    %192 = vmatprep.subr.mxu0 0.0
    %193 = vmatpush1.msra.mxu0 %v65
    %194 = vmatprep.subr.mxu0 0.0
    %195 = vmatpush1.msra.mxu0 %v68
    %196 = vmatprep.subr.mxu0 0.0
    %197 = vmatpush1.msra.mxu0 %v71
    %198 = vmatprep.subr.mxu0 0.0
    %199 = vmatpush1.msra.mxu0 %v74
    %200 = vmatprep.subr.mxu0 0.0
    %201 = vmatpush1.msra.mxu0 %v77
    %202 = vmatprep.subr.mxu0 0.0
    %203 = vmatpush1.msra.mxu0 %v80
    %204 = vmatprep.subr.mxu0 0.0
    %205 = vmatpush1.msra.mxu0 %v83
    %206 = vmatprep.subr.mxu0 0.0
    %207 = vmatpush1.msra.mxu0 %v86
    %208 = vmatprep.subr.mxu0 0.0
    %209 = vmatpush1.msra.mxu0 %v89
    %210 = vmatprep.subr.mxu0 0.0
    %211 = vmatpush1.msra.mxu0 0.0
    %212 = vmatprep.subr.mxu0 0.0
    %213 = vmatpush1.msra.mxu0 0.0
    %214 = vmatprep.subr.mxu0 0.0
    %215 = vmatpush1.msra.mxu0 0.0
    %216 = vmatprep.subr.mxu0 0.0
    %217 = vmatpush1.msra.mxu0 0.0
    %218 = vmatprep.subr.mxu0 0.0
    %219 = vmatpush1.msra.mxu0 0.0
    %220 = vmatprep.subr.mxu0 0.0
    %221 = vmatpush1.msra.mxu0 0.0
    %222 = vmatprep.subr.mxu0 0.0
    %223 = vmatpush1.msra.mxu0 0.0
    %224 = vmatprep.subr.mxu0 0.0
    %225 = vmatpush1.msra.mxu0 0.0
    %226 = vmatprep.subr.mxu0 0.0
    %227 = vmatpush1.msra.mxu0 0.0
    %228 = vmatprep.subr.mxu0 0.0
    %229 = vmatpush1.msra.mxu0 0.0
    %230 = vmatprep.subr.mxu0 0.0
    %231 = vmatpush1.msra.mxu0 0.0
    %232 = vmatprep.subr.mxu0 0.0
    %233 = vmatpush1.msra.mxu0 0.0
    %234 = vmatprep.subr.mxu0 0.0
    %235 = vmatpush1.msra.mxu0 0.0
    %236 = vmatprep.subr.mxu0 0.0
    %237 = vmatpush1.msra.mxu0 0.0
    %238 = vmatprep.subr.mxu0 0.0
    %239 = vmatpush1.msra.mxu0 0.0
    %240 = vmatprep.subr.mxu0 0.0
    %241 = vmatpush1.msra.mxu0 0.0
    %242 = vmatprep.mubr.f32.mxu0 0.0
    %243 = vmatmul.mubr.f32.gmra.mrb[0].mxu0 %v41
    %v244 = vpop.f32.mrb[0].mxu0
    %v245 = vadd.f32 %v103, %v244
    %v246 = vpop.f32.mrb[0].mxu0
    %247 = vdwg.mxu0
    %v250 = vunpack.c.l.s4 1966171168
    %v251 = vunpack.c.0.s8 %v250
    %v252 = vlaneseq
    %v253 = vshrl.u32 %v252, 7
    %v254 = vsub.s32 %v251, %v253
    %v255 = vrot.slane %v174, %v254
    %v256 = vcombine.high %v255, %v255
    %v258 = vunpack.c.l.s4 1966171168
    %v259 = vunpack.c.0.s8 %v258
    %v260 = vlaneseq
    %v261 = vshrl.u32 %v260, 7
    %v262 = vsub.s32 %v259, %v261
    %v263 = vrot.slane %v255, %v262
    %v265 = vunpack.c.l.s4 1966171168
    %v266 = vunpack.c.0.s8 %v265
    %v267 = vlaneseq
    %v268 = vshrl.u32 %v267, 7
    %v269 = vsub.s32 %v266, %v268
    %v270 = vrot.slane %v256, %v269
    %vm273 = vcmask 122880
    %274 = vst.msk [vmem:[#allocation2] sm:$0x1] %vm273, %v263
    %275 = vst.msk [vmem:[#allocation2 + $0x8] sm:$0x1] %vm273, %v270
    %v278 = vunpack.c.l.s4 1966171168
    %v279 = vunpack.c.0.s8 %v278
    %v280 = vlaneseq
    %v281 = vshrl.u32 %v280, 7
    %v282 = vsub.s32 %v279, %v281
    %v283 = vrot.slane %v176, %v282
    %v284 = vcombine.high %v283, %v283
    %v286 = vunpack.c.l.s4 1966171168
    %v287 = vunpack.c.0.s8 %v286
    %v288 = vlaneseq
    %v289 = vshrl.u32 %v288, 7
    %v290 = vsub.s32 %v287, %v289
    %v291 = vrot.slane %v283, %v290
    %v293 = vunpack.c.l.s4 1966171168
    %v294 = vunpack.c.0.s8 %v293
    %v295 = vlaneseq
    %v296 = vshrl.u32 %v295, 7
    %v297 = vsub.s32 %v294, %v296
    %v298 = vrot.slane %v284, %v297
    %301 = vst.msk [vmem:[#allocation3] sm:$0x1] %vm273, %v291
    %302 = vst.msk [vmem:[#allocation3 + $0x8] sm:$0x1] %vm273, %v298
    %v305 = vunpack.c.l.s4 1966171168
    %v306 = vunpack.c.0.s8 %v305
    %v307 = vlaneseq
    %v308 = vshrl.u32 %v307, 7
    %v309 = vsub.s32 %v306, %v308
    %v310 = vrot.slane %v245, %v309
    %v311 = vcombine.high %v310, %v310
    %v313 = vunpack.c.l.s4 1966171168
    %v314 = vunpack.c.0.s8 %v313
    %v315 = vlaneseq
    %v316 = vshrl.u32 %v315, 7
    %v317 = vsub.s32 %v314, %v316
    %v318 = vrot.slane %v310, %v317
    %v320 = vunpack.c.l.s4 1966171168
    %v321 = vunpack.c.0.s8 %v320
    %v322 = vlaneseq
    %v323 = vshrl.u32 %v322, 7
    %v324 = vsub.s32 %v321, %v323
    %v325 = vrot.slane %v311, %v324
    %328 = vst.msk [vmem:[#allocation4] sm:$0x1] %vm273, %v318
    %329 = vst.msk [vmem:[#allocation4 + $0x8] sm:$0x1] %vm273, %v325
    %v330 = vlaneseq
    %v331 = vshrl.u32 %v330, 7
    %v332 = vsub.s32 0, %v331
    %v333 = vrot.slane %v263, %v332
    %v334 = vlaneseq
    %v335 = vshrl.u32 %v334, 7
    %v336 = vsub.s32 0, %v335
    %v337 = vrot.slane %v270, %v336
    %338 = vrot.lane.b32.xlu0 %v333, 112
    %v339 = vpop.permute.xlu0 %338
    %340 = vrot.lane.b32.xlu0 %v337, 112
    %v341 = vpop.permute.xlu0 %340
    %344 = vst.msk [vmem:[#allocation2 + $0x1] sm:$0x1] %vm273, %v339
    %345 = vst.msk [vmem:[#allocation2 + $0x9] sm:$0x1] %vm273, %v341
    %v346 = vlaneseq
    %v347 = vshrl.u32 %v346, 7
    %v348 = vsub.s32 0, %v347
    %v349 = vrot.slane %v291, %v348
    %v350 = vlaneseq
    %v351 = vshrl.u32 %v350, 7
    %v352 = vsub.s32 0, %v351
    %v353 = vrot.slane %v298, %v352
    %354 = vrot.lane.b32.xlu0 %v349, 112
    %v355 = vpop.permute.xlu0 %354
    %356 = vrot.lane.b32.xlu0 %v353, 112
    %v357 = vpop.permute.xlu0 %356
    %360 = vst.msk [vmem:[#allocation3 + $0x1] sm:$0x1] %vm273, %v355
    %361 = vst.msk [vmem:[#allocation3 + $0x9] sm:$0x1] %vm273, %v357
    %v362 = vlaneseq
    %v363 = vshrl.u32 %v362, 7
    %v364 = vsub.s32 0, %v363
    %v365 = vrot.slane %v318, %v364
    %v366 = vlaneseq
    %v367 = vshrl.u32 %v366, 7
    %v368 = vsub.s32 0, %v367
    %v369 = vrot.slane %v325, %v368
    %370 = vrot.lane.b32.xlu0 %v365, 112
    %v371 = vpop.permute.xlu0 %370
    %372 = vrot.lane.b32.xlu0 %v369, 112
    %v373 = vpop.permute.xlu0 %372
    %376 = vst.msk [vmem:[#allocation4 + $0x1] sm:$0x1] %vm273, %v371
    %377 = vst.msk [vmem:[#allocation4 + $0x9] sm:$0x1] %vm273, %v373
    %378 = vrot.lane.b32.xlu0 %v333, 96
    %v379 = vpop.permute.xlu0 %378
    %380 = vrot.lane.b32.xlu0 %v337, 96
    %v381 = vpop.permute.xlu0 %380
    %384 = vst.msk [vmem:[#allocation2 + $0x2] sm:$0x1] %vm273, %v379
    %385 = vst.msk [vmem:[#allocation2 + $0xa] sm:$0x1] %vm273, %v381
    %386 = vrot.lane.b32.xlu0 %v349, 96
    %v387 = vpop.permute.xlu0 %386
    %388 = vrot.lane.b32.xlu0 %v353, 96
    %v389 = vpop.permute.xlu0 %388
    %392 = vst.msk [vmem:[#allocation3 + $0x2] sm:$0x1] %vm273, %v387
    %393 = vst.msk [vmem:[#allocation3 + $0xa] sm:$0x1] %vm273, %v389
    %394 = vrot.lane.b32.xlu0 %v365, 96
    %v395 = vpop.permute.xlu0 %394
    %396 = vrot.lane.b32.xlu0 %v369, 96
    %v397 = vpop.permute.xlu0 %396
    %400 = vst.msk [vmem:[#allocation4 + $0x2] sm:$0x1] %vm273, %v395
    %401 = vst.msk [vmem:[#allocation4 + $0xa] sm:$0x1] %vm273, %v397
    %402 = vrot.lane.b32.xlu0 %v333, 80
    %v403 = vpop.permute.xlu0 %402
    %404 = vrot.lane.b32.xlu0 %v337, 80
    %v405 = vpop.permute.xlu0 %404
    %408 = vst.msk [vmem:[#allocation2 + $0x3] sm:$0x1] %vm273, %v403
    %409 = vst.msk [vmem:[#allocation2 + $0xb] sm:$0x1] %vm273, %v405
    %410 = vrot.lane.b32.xlu0 %v349, 80
    %v411 = vpop.permute.xlu0 %410
    %412 = vrot.lane.b32.xlu0 %v353, 80
    %v413 = vpop.permute.xlu0 %412
    %416 = vst.msk [vmem:[#allocation3 + $0x3] sm:$0x1] %vm273, %v411
    %417 = vst.msk [vmem:[#allocation3 + $0xb] sm:$0x1] %vm273, %v413
    %418 = vrot.lane.b32.xlu0 %v365, 80
    %v419 = vpop.permute.xlu0 %418
    %420 = vrot.lane.b32.xlu0 %v369, 80
    %v421 = vpop.permute.xlu0 %420
    %424 = vst.msk [vmem:[#allocation4 + $0x3] sm:$0x1] %vm273, %v419
    %425 = vst.msk [vmem:[#allocation4 + $0xb] sm:$0x1] %vm273, %v421
    %426 = vrot.lane.b32.xlu0 %v333, 64
    %v427 = vpop.permute.xlu0 %426
    %428 = vrot.lane.b32.xlu0 %v337, 64
    %v429 = vpop.permute.xlu0 %428
    %432 = vst.msk [vmem:[#allocation2 + $0x4] sm:$0x1] %vm273, %v427
    %433 = vst.msk [vmem:[#allocation2 + $0xc] sm:$0x1] %vm273, %v429
    %434 = vrot.lane.b32.xlu0 %v349, 64
    %v435 = vpop.permute.xlu0 %434
    %436 = vrot.lane.b32.xlu0 %v353, 64
    %v437 = vpop.permute.xlu0 %436
    %440 = vst.msk [vmem:[#allocation3 + $0x4] sm:$0x1] %vm273, %v435
    %441 = vst.msk [vmem:[#allocation3 + $0xc] sm:$0x1] %vm273, %v437
    %442 = vrot.lane.b32.xlu0 %v365, 64
    %v443 = vpop.permute.xlu0 %442
    %444 = vrot.lane.b32.xlu0 %v369, 64
    %v445 = vpop.permute.xlu0 %444
    %448 = vst.msk [vmem:[#allocation4 + $0x4] sm:$0x1] %vm273, %v443
    %449 = vst.msk [vmem:[#allocation4 + $0xc] sm:$0x1] %vm273, %v445
    %450 = vrot.lane.b32.xlu0 %v333, 48
    %v451 = vpop.permute.xlu0 %450
    %452 = vrot.lane.b32.xlu0 %v337, 48
    %v453 = vpop.permute.xlu0 %452
    %456 = vst.msk [vmem:[#allocation2 + $0x5] sm:$0x1] %vm273, %v451
    %457 = vst.msk [vmem:[#allocation2 + $0xd] sm:$0x1] %vm273, %v453
    %458 = vrot.lane.b32.xlu0 %v349, 48
    %v459 = vpop.permute.xlu0 %458
    %460 = vrot.lane.b32.xlu0 %v353, 48
    %v461 = vpop.permute.xlu0 %460
    %464 = vst.msk [vmem:[#allocation3 + $0x5] sm:$0x1] %vm273, %v459
    %465 = vst.msk [vmem:[#allocation3 + $0xd] sm:$0x1] %vm273, %v461
    %466 = vrot.lane.b32.xlu0 %v365, 48
    %v467 = vpop.permute.xlu0 %466
    %468 = vrot.lane.b32.xlu0 %v369, 48
    %v469 = vpop.permute.xlu0 %468
    %472 = vst.msk [vmem:[#allocation4 + $0x5] sm:$0x1] %vm273, %v467
    %473 = vst.msk [vmem:[#allocation4 + $0xd] sm:$0x1] %vm273, %v469
    %474 = vrot.lane.b32.xlu0 %v333, 32
    %v475 = vpop.permute.xlu0 %474
    %476 = vrot.lane.b32.xlu0 %v337, 32
    %v477 = vpop.permute.xlu0 %476
    %480 = vst.msk [vmem:[#allocation2 + $0x6] sm:$0x1] %vm273, %v475
    %481 = vst.msk [vmem:[#allocation2 + $0xe] sm:$0x1] %vm273, %v477
    %482 = vrot.lane.b32.xlu0 %v349, 32
    %v483 = vpop.permute.xlu0 %482
    %484 = vrot.lane.b32.xlu0 %v353, 32
    %v485 = vpop.permute.xlu0 %484
    %488 = vst.msk [vmem:[#allocation3 + $0x6] sm:$0x1] %vm273, %v483
    %489 = vst.msk [vmem:[#allocation3 + $0xe] sm:$0x1] %vm273, %v485
    %490 = vrot.lane.b32.xlu0 %v365, 32
    %v491 = vpop.permute.xlu0 %490
    %492 = vrot.lane.b32.xlu0 %v369, 32
    %v493 = vpop.permute.xlu0 %492
    %496 = vst.msk [vmem:[#allocation4 + $0x6] sm:$0x1] %vm273, %v491
    %497 = vst.msk [vmem:[#allocation4 + $0xe] sm:$0x1] %vm273, %v493
    %498 = vrot.lane.b32.xlu0 %v333, 16
    %v499 = vpop.permute.xlu0 %498
    %500 = vrot.lane.b32.xlu0 %v337, 16
    %v501 = vpop.permute.xlu0 %500
    %504 = vst.msk [vmem:[#allocation2 + $0x7] sm:$0x1] %vm273, %v499
    %505 = vst.msk [vmem:[#allocation2 + $0xf] sm:$0x1] %vm273, %v501
    %506 = vrot.lane.b32.xlu0 %v349, 16
    %v507 = vpop.permute.xlu0 %506
    %508 = vrot.lane.b32.xlu0 %v353, 16
    %v509 = vpop.permute.xlu0 %508
    %512 = vst.msk [vmem:[#allocation3 + $0x7] sm:$0x1] %vm273, %v507
    %513 = vst.msk [vmem:[#allocation3 + $0xf] sm:$0x1] %vm273, %v509
    %514 = vrot.lane.b32.xlu0 %v365, 16
    %v515 = vpop.permute.xlu0 %514
    %516 = vrot.lane.b32.xlu0 %v369, 16
    %v517 = vpop.permute.xlu0 %516
    %520 = vst.msk [vmem:[#allocation4 + $0x7] sm:$0x1] %vm273, %v515
    %521 = vst.msk [vmem:[#allocation4 + $0xf] sm:$0x1] %vm273, %v517
    %v522 = vld [vmem:[#allocation2] sm:$0xff]
    %v523 = vld [vmem:[#allocation2 + $0x8] sm:$0xff]
    %v524 = vld [vmem:[#allocation3] sm:$0xff]
    %v525 = vld [vmem:[#allocation3 + $0x8] sm:$0xff]
    %v526 = vld [vmem:[#allocation4] sm:$0xff]
    %v527 = vld [vmem:[#allocation4 + $0x8] sm:$0xff]
    %vm528 = vcmask 130048
    %v530 = vsel %vm528, %v522, 0
    %v533 = vsel %vm528, %v524, 0
    %535 = vmatprep.subr.mxu0 0.0
    %536 = vmatpush1.xpose.msra.mxu0 %v533
    %537 = vmatprep.subr.mxu0 0.0
    %538 = vmatpush1.xpose.msra.mxu0 0.0
    %539 = vmatprep.subr.mxu0 0.0
    %540 = vmatpush1.xpose.msra.mxu0 0.0
    %541 = vmatprep.subr.mxu0 0.0
    %542 = vmatpush1.xpose.msra.mxu0 0.0
    %543 = vmatprep.subr.mxu0 0.0
    %544 = vmatpush1.xpose.msra.mxu0 0.0
    %545 = vmatprep.subr.mxu0 0.0
    %546 = vmatpush1.xpose.msra.mxu0 0.0
    %547 = vmatprep.subr.mxu0 0.0
    %548 = vmatpush1.xpose.msra.mxu0 0.0
    %549 = vmatprep.subr.mxu0 0.0
    %550 = vmatpush1.xpose.msra.mxu0 0.0
    %551 = vmatprep.subr.mxu0 0.0
    %552 = vmatpush1.xpose.msra.mxu0 0.0
    %553 = vmatprep.subr.mxu0 0.0
    %554 = vmatpush1.xpose.msra.mxu0 0.0
    %555 = vmatprep.subr.mxu0 0.0
    %556 = vmatpush1.xpose.msra.mxu0 0.0
    %557 = vmatprep.subr.mxu0 0.0
    %558 = vmatpush1.xpose.msra.mxu0 0.0
    %559 = vmatprep.subr.mxu0 0.0
    %560 = vmatpush1.xpose.msra.mxu0 0.0
    %561 = vmatprep.subr.mxu0 0.0
    %562 = vmatpush1.xpose.msra.mxu0 0.0
    %563 = vmatprep.subr.mxu0 0.0
    %564 = vmatpush1.xpose.msra.mxu0 0.0
    %565 = vmatprep.subr.mxu0 0.0
    %566 = vmatpush1.xpose.msra.mxu0 0.0
    %567 = vmatprep.subr.mxu0 0.0
    %568 = vmatpush1.xpose.msra.mxu0 0.0
    %569 = vmatprep.subr.mxu0 0.0
    %570 = vmatpush1.xpose.msra.mxu0 0.0
    %571 = vmatprep.subr.mxu0 0.0
    %572 = vmatpush1.xpose.msra.mxu0 0.0
    %573 = vmatprep.subr.mxu0 0.0
    %574 = vmatpush1.xpose.msra.mxu0 0.0
    %575 = vmatprep.subr.mxu0 0.0
    %576 = vmatpush1.xpose.msra.mxu0 0.0
    %577 = vmatprep.subr.mxu0 0.0
    %578 = vmatpush1.xpose.msra.mxu0 0.0
    %579 = vmatprep.subr.mxu0 0.0
    %580 = vmatpush1.xpose.msra.mxu0 0.0
    %581 = vmatprep.subr.mxu0 0.0
    %582 = vmatpush1.xpose.msra.mxu0 0.0
    %583 = vmatprep.subr.mxu0 0.0
    %584 = vmatpush1.xpose.msra.mxu0 0.0
    %585 = vmatprep.subr.mxu0 0.0
    %586 = vmatpush1.xpose.msra.mxu0 0.0
    %587 = vmatprep.subr.mxu0 0.0
    %588 = vmatpush1.xpose.msra.mxu0 0.0
    %589 = vmatprep.subr.mxu0 0.0
    %590 = vmatpush1.xpose.msra.mxu0 0.0
    %591 = vmatprep.subr.mxu0 0.0
    %592 = vmatpush1.xpose.msra.mxu0 0.0
    %593 = vmatprep.subr.mxu0 0.0
    %594 = vmatpush1.xpose.msra.mxu0 0.0
    %595 = vmatprep.subr.mxu0 0.0
    %596 = vmatpush1.xpose.msra.mxu0 0.0
    %597 = vmatprep.subr.mxu0 0.0
    %598 = vmatpush1.xpose.msra.mxu0 0.0
    %599 = vmatprep.mubr.f32.mxu0 0.0
    %600 = vmatmul.mubr.f32.gmra.mrb[0].mxu0 %v530
    %v601 = vpop.f32.mrb[0].mxu0
    %v602 = vadd.f32 0.0, %v601
    %v603 = vpop.f32.mrb[0].mxu0
    %604 = vdwg.mxu0
    %v606 = vsel %vm528, %v523, 0
    %v609 = vsel %vm528, %v525, 0
    %611 = vmatprep.subr.mxu0 0.0
    %612 = vmatpush1.xpose.msra.mxu0 %v609
    %613 = vmatprep.subr.mxu0 0.0
    %614 = vmatpush1.xpose.msra.mxu0 0.0
    %615 = vmatprep.subr.mxu0 0.0
    %616 = vmatpush1.xpose.msra.mxu0 0.0
    %617 = vmatprep.subr.mxu0 0.0
    %618 = vmatpush1.xpose.msra.mxu0 0.0
    %619 = vmatprep.subr.mxu0 0.0
    %620 = vmatpush1.xpose.msra.mxu0 0.0
    %621 = vmatprep.subr.mxu0 0.0
    %622 = vmatpush1.xpose.msra.mxu0 0.0
    %623 = vmatprep.subr.mxu0 0.0
    %624 = vmatpush1.xpose.msra.mxu0 0.0
    %625 = vmatprep.subr.mxu0 0.0
    %626 = vmatpush1.xpose.msra.mxu0 0.0
    %627 = vmatprep.subr.mxu0 0.0
    %628 = vmatpush1.xpose.msra.mxu0 0.0
    %629 = vmatprep.subr.mxu0 0.0
    %630 = vmatpush1.xpose.msra.mxu0 0.0
    %631 = vmatprep.subr.mxu0 0.0
    %632 = vmatpush1.xpose.msra.mxu0 0.0
    %633 = vmatprep.subr.mxu0 0.0
    %634 = vmatpush1.xpose.msra.mxu0 0.0
    %635 = vmatprep.subr.mxu0 0.0
    %636 = vmatpush1.xpose.msra.mxu0 0.0
    %637 = vmatprep.subr.mxu0 0.0
    %638 = vmatpush1.xpose.msra.mxu0 0.0
    %639 = vmatprep.subr.mxu0 0.0
    %640 = vmatpush1.xpose.msra.mxu0 0.0
    %641 = vmatprep.subr.mxu0 0.0
    %642 = vmatpush1.xpose.msra.mxu0 0.0
    %643 = vmatprep.subr.mxu0 0.0
    %644 = vmatpush1.xpose.msra.mxu0 0.0
    %645 = vmatprep.subr.mxu0 0.0
    %646 = vmatpush1.xpose.msra.mxu0 0.0
    %647 = vmatprep.subr.mxu0 0.0
    %648 = vmatpush1.xpose.msra.mxu0 0.0
    %649 = vmatprep.subr.mxu0 0.0
    %650 = vmatpush1.xpose.msra.mxu0 0.0
    %651 = vmatprep.subr.mxu0 0.0
    %652 = vmatpush1.xpose.msra.mxu0 0.0
    %653 = vmatprep.subr.mxu0 0.0
    %654 = vmatpush1.xpose.msra.mxu0 0.0
    %655 = vmatprep.subr.mxu0 0.0
    %656 = vmatpush1.xpose.msra.mxu0 0.0
    %657 = vmatprep.subr.mxu0 0.0
    %658 = vmatpush1.xpose.msra.mxu0 0.0
    %659 = vmatprep.subr.mxu0 0.0
    %660 = vmatpush1.xpose.msra.mxu0 0.0
    %661 = vmatprep.subr.mxu0 0.0
    %662 = vmatpush1.xpose.msra.mxu0 0.0
    %663 = vmatprep.subr.mxu0 0.0
    %664 = vmatpush1.xpose.msra.mxu0 0.0
    %665 = vmatprep.subr.mxu0 0.0
    %666 = vmatpush1.xpose.msra.mxu0 0.0
    %667 = vmatprep.subr.mxu0 0.0
    %668 = vmatpush1.xpose.msra.mxu0 0.0
    %669 = vmatprep.subr.mxu0 0.0
    %670 = vmatpush1.xpose.msra.mxu0 0.0
    %671 = vmatprep.subr.mxu0 0.0
    %672 = vmatpush1.xpose.msra.mxu0 0.0
    %673 = vmatprep.subr.mxu0 0.0
    %674 = vmatpush1.xpose.msra.mxu0 0.0
    %675 = vmatprep.mubr.f32.mxu0 0.0
    %676 = vmatmul.mubr.f32.gmra.mrb[0].mxu0 %v606
    %v677 = vpop.f32.mrb[0].mxu0
    %v678 = vadd.f32 0.0, %v677
    %v679 = vpop.f32.mrb[0].mxu0
    %680 = vdwg.mxu0
    %vm681 = vcmask 64512
    %v682 = vsel %vm681, %v602, -inf
    %v683 = vrot.slane %v682, 4
    %v684 = vmax.f32 %v682, %v683
    %v685 = vrot.slane %v684, 2
    %v686 = vmax.f32 %v684, %v685
    %v687 = vrot.slane %v686, 1
    %v688 = vmax.f32 %v686, %v687
    %v689 = vsel %vm681, %v678, -inf
    %v690 = vrot.slane %v689, 4
    %v691 = vmax.f32 %v689, %v690
    %v692 = vrot.slane %v691, 2
    %v693 = vmax.f32 %v691, %v692
    %v694 = vrot.slane %v693, 1
    %v695 = vmax.f32 %v693, %v694
    %v696 = vsub.f32 %v602, %v688
    %v697 = vsub.f32 %v678, %v695
    %v698 = vmul.f32 %v696, 1.442695
    %v699 = vpow.pop %v698
    %v700 = vmul.f32 %v697, 1.442695
    %v701 = vpow.pop %v700
    %v702 = vsel %vm681, %v699, 0.0
    %v703 = vrot.slane %v702, 4
    %v704 = vadd.f32 %v702, %v703
    %v705 = vrot.slane %v704, 2
    %v706 = vadd.f32 %v704, %v705
    %v707 = vrot.slane %v706, 1
    %v708 = vadd.f32 %v706, %v707
    %v709 = vsel %vm681, %v701, 0.0
    %v710 = vrot.slane %v709, 4
    %v711 = vadd.f32 %v709, %v710
    %v712 = vrot.slane %v711, 2
    %v713 = vadd.f32 %v711, %v712
    %v714 = vrot.slane %v713, 1
    %v715 = vadd.f32 %v713, %v714
    %v716 = vrcp.pop %v708
    %v717 = vrcp.pop %v715
    %v718 = vmul.f32 %v699, %v716
    %v719 = vmul.f32 %v701, %v717
    %v721 = vsel %vm681, %v718, 0
    %723 = vmatprep.subr.mxu0 0.0
    %724 = vmatpush1.msra.mxu0 %v526
    %725 = vmatprep.subr.mxu0 0.0
    %726 = vmatpush1.msra.mxu0 0.0
    %727 = vmatprep.subr.mxu0 0.0
    %728 = vmatpush1.msra.mxu0 0.0
    %729 = vmatprep.subr.mxu0 0.0
    %730 = vmatpush1.msra.mxu0 0.0
    %731 = vmatprep.subr.mxu0 0.0
    %732 = vmatpush1.msra.mxu0 0.0
    %733 = vmatprep.subr.mxu0 0.0
    %734 = vmatpush1.msra.mxu0 0.0
    %735 = vmatprep.subr.mxu0 0.0
    %736 = vmatpush1.msra.mxu0 0.0
    %737 = vmatprep.subr.mxu0 0.0
    %738 = vmatpush1.msra.mxu0 0.0
    %739 = vmatprep.subr.mxu0 0.0
    %740 = vmatpush1.msra.mxu0 0.0
    %741 = vmatprep.subr.mxu0 0.0
    %742 = vmatpush1.msra.mxu0 0.0
    %743 = vmatprep.subr.mxu0 0.0
    %744 = vmatpush1.msra.mxu0 0.0
    %745 = vmatprep.subr.mxu0 0.0
    %746 = vmatpush1.msra.mxu0 0.0
    %747 = vmatprep.subr.mxu0 0.0
    %748 = vmatpush1.msra.mxu0 0.0
    %749 = vmatprep.subr.mxu0 0.0
    %750 = vmatpush1.msra.mxu0 0.0
    %751 = vmatprep.subr.mxu0 0.0
    %752 = vmatpush1.msra.mxu0 0.0
    %753 = vmatprep.subr.mxu0 0.0
    %754 = vmatpush1.msra.mxu0 0.0
    %755 = vmatprep.subr.mxu0 0.0
    %756 = vmatpush1.msra.mxu0 0.0
    %757 = vmatprep.subr.mxu0 0.0
    %758 = vmatpush1.msra.mxu0 0.0
    %759 = vmatprep.subr.mxu0 0.0
    %760 = vmatpush1.msra.mxu0 0.0
    %761 = vmatprep.subr.mxu0 0.0
    %762 = vmatpush1.msra.mxu0 0.0
    %763 = vmatprep.subr.mxu0 0.0
    %764 = vmatpush1.msra.mxu0 0.0
    %765 = vmatprep.subr.mxu0 0.0
    %766 = vmatpush1.msra.mxu0 0.0
    %767 = vmatprep.subr.mxu0 0.0
    %768 = vmatpush1.msra.mxu0 0.0
    %769 = vmatprep.subr.mxu0 0.0
    %770 = vmatpush1.msra.mxu0 0.0
    %771 = vmatprep.subr.mxu0 0.0
    %772 = vmatpush1.msra.mxu0 0.0
    %773 = vmatprep.subr.mxu0 0.0
    %774 = vmatpush1.msra.mxu0 0.0
    %775 = vmatprep.subr.mxu0 0.0
    %776 = vmatpush1.msra.mxu0 0.0
    %777 = vmatprep.subr.mxu0 0.0
    %778 = vmatpush1.msra.mxu0 0.0
    %779 = vmatprep.subr.mxu0 0.0
    %780 = vmatpush1.msra.mxu0 0.0
    %781 = vmatprep.subr.mxu0 0.0
    %782 = vmatpush1.msra.mxu0 0.0
    %783 = vmatprep.subr.mxu0 0.0
    %784 = vmatpush1.msra.mxu0 0.0
    %785 = vmatprep.subr.mxu0 0.0
    %786 = vmatpush1.msra.mxu0 0.0
    %787 = vmatprep.mubr.f32.mxu0 0.0
    %788 = vmatmul.mubr.f32.gmra.mrb[0].mxu0 %v721
    %v789 = vpop.f32.mrb[0].mxu0
    %v790 = vadd.f32 0.0, %v789
    %v791 = vpop.f32.mrb[0].mxu0
    %792 = vdwg.mxu0
    %v794 = vsel %vm681, %v719, 0
    %796 = vmatprep.subr.mxu0 0.0
    %797 = vmatpush1.msra.mxu0 %v527
    %798 = vmatprep.subr.mxu0 0.0
    %799 = vmatpush1.msra.mxu0 0.0
    %800 = vmatprep.subr.mxu0 0.0
    %801 = vmatpush1.msra.mxu0 0.0
    %802 = vmatprep.subr.mxu0 0.0
    %803 = vmatpush1.msra.mxu0 0.0
    %804 = vmatprep.subr.mxu0 0.0
    %805 = vmatpush1.msra.mxu0 0.0
    %806 = vmatprep.subr.mxu0 0.0
    %807 = vmatpush1.msra.mxu0 0.0
    %808 = vmatprep.subr.mxu0 0.0
    %809 = vmatpush1.msra.mxu0 0.0
    %810 = vmatprep.subr.mxu0 0.0
    %811 = vmatpush1.msra.mxu0 0.0
    %812 = vmatprep.subr.mxu0 0.0
    %813 = vmatpush1.msra.mxu0 0.0
    %814 = vmatprep.subr.mxu0 0.0
    %815 = vmatpush1.msra.mxu0 0.0
    %816 = vmatprep.subr.mxu0 0.0
    %817 = vmatpush1.msra.mxu0 0.0
    %818 = vmatprep.subr.mxu0 0.0
    %819 = vmatpush1.msra.mxu0 0.0
    %820 = vmatprep.subr.mxu0 0.0
    %821 = vmatpush1.msra.mxu0 0.0
    %822 = vmatprep.subr.mxu0 0.0
    %823 = vmatpush1.msra.mxu0 0.0
    %824 = vmatprep.subr.mxu0 0.0
    %825 = vmatpush1.msra.mxu0 0.0
    %826 = vmatprep.subr.mxu0 0.0
    %827 = vmatpush1.msra.mxu0 0.0
    %828 = vmatprep.subr.mxu0 0.0
    %829 = vmatpush1.msra.mxu0 0.0
    %830 = vmatprep.subr.mxu0 0.0
    %831 = vmatpush1.msra.mxu0 0.0
    %832 = vmatprep.subr.mxu0 0.0
    %833 = vmatpush1.msra.mxu0 0.0
    %834 = vmatprep.subr.mxu0 0.0
    %835 = vmatpush1.msra.mxu0 0.0
    %836 = vmatprep.subr.mxu0 0.0
    %837 = vmatpush1.msra.mxu0 0.0
    %838 = vmatprep.subr.mxu0 0.0
    %839 = vmatpush1.msra.mxu0 0.0
    %840 = vmatprep.subr.mxu0 0.0
    %841 = vmatpush1.msra.mxu0 0.0
    %842 = vmatprep.subr.mxu0 0.0
    %843 = vmatpush1.msra.mxu0 0.0
    %844 = vmatprep.subr.mxu0 0.0
    %845 = vmatpush1.msra.mxu0 0.0
    %846 = vmatprep.subr.mxu0 0.0
    %847 = vmatpush1.msra.mxu0 0.0
    %848 = vmatprep.subr.mxu0 0.0
    %849 = vmatpush1.msra.mxu0 0.0
    %850 = vmatprep.subr.mxu0 0.0
    %851 = vmatpush1.msra.mxu0 0.0
    %852 = vmatprep.subr.mxu0 0.0
    %853 = vmatpush1.msra.mxu0 0.0
    %854 = vmatprep.subr.mxu0 0.0
    %855 = vmatpush1.msra.mxu0 0.0
    %856 = vmatprep.subr.mxu0 0.0
    %857 = vmatpush1.msra.mxu0 0.0
    %858 = vmatprep.subr.mxu0 0.0
    %859 = vmatpush1.msra.mxu0 0.0
    %860 = vmatprep.mubr.f32.mxu0 0.0
    %861 = vmatmul.mubr.f32.gmra.mrb[0].mxu0 %v794
    %v862 = vpop.f32.mrb[0].mxu0
    %v863 = vadd.f32 0.0, %v862
    %v864 = vpop.f32.mrb[0].mxu0
    %865 = vdwg.mxu0
    %v868 = vrot.slane %v863, 7
    %vm869 = vcmask 1041409
    %v870 = vsel %vm869, %v868, %v790
    %vm872 = vcmask 123904
    %873 = vst.msk [vmem:[#allocation10] sm:$0x3] %vm872, %v870
    %vm874 = vcmask 1042434
    %v875 = vsel %vm874, %v868, %v790
    %876 = vrot.lane.b32.xlu0 %v875, 16
    %v877 = vpop.permute.xlu0 %876
    %vm879 = vcmask 256129
    %880 = vst.msk [vmem:[#allocation10 - $0x1] sm:$0x6] %vm879, %v877
    %vm881 = vcmask 1043459
    %v882 = vsel %vm881, %v868, %v790
    %883 = vrot.lane.b32.xlu0 %v882, 32
    %v884 = vpop.permute.xlu0 %883
    %vm886 = vcmask 388354
    %887 = vst.msk [vmem:[#allocation10 - $0x2] sm:$0xc] %vm886, %v884
    %vm888 = vcmask 1044484
    %v889 = vsel %vm888, %v868, %v790
    %890 = vrot.lane.b32.xlu0 %v889, 48
    %v891 = vpop.permute.xlu0 %890
    %vm893 = vcmask 520579
    %894 = vst.msk [vmem:[#allocation10 - $0x3] sm:$0x18] %vm893, %v891
    %vm895 = vcmask 1045509
    %v896 = vsel %vm895, %v868, %v790
    %897 = vrot.lane.b32.xlu0 %v896, 64
    %v898 = vpop.permute.xlu0 %897
    %vm900 = vcmask 652804
    %901 = vst.msk [vmem:[#allocation10 - $0x4] sm:$0x30] %vm900, %v898
    %vm902 = vcmask 1046534
    %v903 = vsel %vm902, %v868, %v790
    %904 = vrot.lane.b32.xlu0 %v903, 80
    %v905 = vpop.permute.xlu0 %904
    %vm907 = vcmask 785029
    %908 = vst.msk [vmem:[#allocation10 - $0x5] sm:$0x60] %vm907, %v905
    %vm909 = vcmask 1047559
    %v910 = vsel %vm909, %v868, %v790
    %911 = vrot.lane.b32.xlu0 %v910, 96
    %v912 = vpop.permute.xlu0 %911
    %vm914 = vcmask 917254
    %915 = vst.msk [vmem:[#allocation10 - $0x6] sm:$0xc0] %vm914, %v912
    %916 = vrot.lane.b32.xlu0 %v790, 112
    %v917 = vpop.permute.xlu0 %916
    %918 = vrot.lane.b32.xlu0 %v868, 112
    %v919 = vpop.permute.xlu0 %918
    %vm922 = vcmask 1048455
    %923 = vst.msk [vmem:[#allocation10 - $0x7] sm:$0x80] %vm922, %v917
    %vm924 = vcmask 1041280
    %925 = vst.msk [vmem:[#allocation10 + $0x1] sm:$0x1] %vm924, %v919
    // Predicated region
    $region22: #{tpu_custom_call.1} parent=1 // pred_check
      _
    $region23: #{tpu_custom_call.1} parent=1 // pred_check_branch
      %927 = sbr.rel (0) target = $region25
    $region24: #{tpu_custom_call.1} parent=1 // pred_region
      %s929 = ssub.s32 32, 32
      %930 = vsyncadd [#allocation7], %s929
      %s932 = sshll.u32 [#allocation10], 4
      %s933 = int_to_ptr.vmem [resolvable:$true] %s932
      %935 = dma.vmem_to_hbm [thread:$0]  %s933, 32, %s3, [#allocation7]
    $region25: #{tpu_custom_call.1} parent=1 // pred_fallthru
      _
    // Predicated region
    $region26: #{tpu_custom_call.1} parent=1 // pred_check
      _
    $region27: #{tpu_custom_call.1} parent=1 // pred_check_branch
      %937 = sbr.rel (0) target = $region29
    $region28: #{tpu_custom_call.1} parent=1 // pred_region
      %938 = dma.done [#allocation7], 32
    $region29: #{tpu_custom_call.1} parent=1 // pred_fallthru
      _
    %939 = vsyncpa [#allocation6], 1
    %940 = vsyncpa [#allocation9], 1
    %941 = vsyncpa [#allocation7], 1

</llo_original>
